<compile_context>
chip_gen: v5e
topology: v5e:2x2
jax: 0.10.0
libtpu: 0.0.40
codegen_flags: <defaults>
</compile_context>

<pallas_src>
import jax
import jax.numpy as jnp
from jax import lax
from jax.experimental import pallas as pl
from jax.experimental.pallas import tpu as pltpu

NUM_CLASSES = 2
LN_EPS = 1e-12        # BeitConfig.layer_norm_eps
D1 = 256
D2 = 128
OUT_PAD = 128         # lane-dense padded fc3 width (>= NUM_CLASSES)


def beit_head_kernel(h_ref, ln_g_ref, ln_b_ref,
                     w1_ref, b1_ref, w2_ref, b2_ref, w3_ref, b3_ref,
                     out_ref):
    # ---- BeitPooler: mean over patch tokens (drop CLS) + LayerNorm ---------
    # hidden tile: [TB, S, H] streamed as bf16; accumulate in f32.
    h = h_ref[...].astype(jnp.float32)
    s = h.shape[1]
    # Avoid the unaligned [:, 1:, :] slice: sum the aligned full tile along
    # the token axis and subtract the CLS row.
    total = jnp.sum(h, axis=1)                        # [TB, H]
    cls_tok = h[:, 0, :]                              # [TB, H]
    pooled = (total - cls_tok) * (1.0 / float(s - 1))

    mu = jnp.mean(pooled, axis=-1, keepdims=True)
    var = jnp.mean((pooled - mu) ** 2, axis=-1, keepdims=True)
    x = (pooled - mu) * lax.rsqrt(var + LN_EPS)
    x = x * ln_g_ref[...] + ln_b_ref[...]             # [TB, H] == pooler_output

    # ---- fc1 -> ReLU --------------------------------------------------------
    x = jnp.dot(x, w1_ref[...], preferred_element_type=jnp.float32) + b1_ref[...]
    x = jnp.maximum(x, 0.0)

    # ---- fc2 -> ReLU --------------------------------------------------------
    x = jnp.dot(x, w2_ref[...], preferred_element_type=jnp.float32) + b2_ref[...]
    x = jnp.maximum(x, 0.0)

    # ---- fc3 (lane-padded to 128) -> Sigmoid --------------------------------
    x = jnp.dot(x, w3_ref[...], preferred_element_type=jnp.float32) + b3_ref[...]
    out_ref[...] = jax.nn.sigmoid(x)


def beit_classifier_head(hidden_states, params, *, tb=32):
    """hidden_states: [B, S, H] f32 (or bf16); params: dict of head weights."""
    B, S, H = hidden_states.shape

    # Batch tile: multiple of 8, no larger than needed, v7x-VMEM safe.
    tb = max(8, min(int(tb), 128))
    tb = (tb // 8) * 8
    tb = min(tb, ((B + 7) // 8) * 8)
    b_pad = pl.cdiv(B, tb) * tb
    if b_pad != B:
        hidden_states = jnp.pad(
            hidden_states, ((0, b_pad - B), (0, 0), (0, 0)))

    # Stream the dominant tensor in bf16 (memory-bound kernel).
    h_bf16 = hidden_states.astype(jnp.bfloat16)

    # Pad fc3 to a lane-dense 128-wide output; sliced back below.
    w3p = jnp.pad(params["w3"], ((0, 0), (0, OUT_PAD - params["w3"].shape[1])))
    b3p = jnp.pad(params["b3"], ((0, 0), (0, OUT_PAD - params["b3"].shape[1])))

    grid = (b_pad // tb,)

    def h_map(b):
        return (b, 0, 0)

    def const2(b):
        return (0, 0)

    in_specs = [
        pl.BlockSpec((tb, S, H), h_map),
        pl.BlockSpec(params["ln_g"].shape, const2),
        pl.BlockSpec(params["ln_b"].shape, const2),
        pl.BlockSpec(params["w1"].shape, const2),
        pl.BlockSpec(params["b1"].shape, const2),
        pl.BlockSpec(params["w2"].shape, const2),
        pl.BlockSpec(params["b2"].shape, const2),
        pl.BlockSpec(w3p.shape, const2),
        pl.BlockSpec(b3p.shape, const2),
    ]
    out_specs = pl.BlockSpec((tb, OUT_PAD), lambda b: (b, 0))

    flops = 2 * b_pad * (S * H + H * D1 + D1 * D2 + D2 * OUT_PAD)
    bytes_accessed = (b_pad * S * H * 2                      # bf16 hidden stream
                      + (H * D1 + D1 * D2 + D2 * OUT_PAD) * 4
                      + b_pad * OUT_PAD * 4)
    transcendentals = b_pad * (1 + OUT_PAD)                  # rsqrt + sigmoid

    out = pl.pallas_call(
        beit_head_kernel,
        out_shape=jax.ShapeDtypeStruct((b_pad, OUT_PAD), jnp.float32),
        grid=grid,
        in_specs=in_specs,
        out_specs=out_specs,
        compiler_params=pltpu.CompilerParams(
            dimension_semantics=("parallel",),
            vmem_limit_bytes=32 * 1024 * 1024),
        cost_estimate=pl.CostEstimate(
            flops=flops,
            transcendentals=transcendentals,
            bytes_accessed=bytes_accessed),
    )(h_bf16,
      params["ln_g"], params["ln_b"],
      params["w1"], params["b1"],
      params["w2"], params["b2"],
      w3p, b3p)

    return out[:B, :NUM_CLASSES]


def init_params(key, hidden_size, d1=D1, d2=D2, num_classes=NUM_CLASSES):
    ks = jax.random.split(key, 3)

    def lin(k, fan_in, fan_out):
        bound = 1.0 / jnp.sqrt(fan_in)
        kw, kb = jax.random.split(k)
        w = jax.random.uniform(kw, (fan_in, fan_out), jnp.float32, -bound, bound)
        b = jax.random.uniform(kb, (1, fan_out), jnp.float32, -bound, bound)
        return w, b

    w1, b1 = lin(ks[0], hidden_size, d1)
    w2, b2 = lin(ks[1], d1, d2)
    w3, b3 = lin(ks[2], d2, num_classes)
    return {
        "ln_g": jnp.ones((1, hidden_size), jnp.float32),
        "ln_b": jnp.zeros((1, hidden_size), jnp.float32),
        "w1": w1, "b1": b1,
        "w2": w2, "b2": b2,
        "w3": w3, "b3": b3,
    }


def reference_head(hidden_states, params):
    """Pure-JAX reference (same bf16 input cast as the kernel)."""
    h = hidden_states.astype(jnp.bfloat16).astype(jnp.float32)
    pooled = jnp.mean(h[:, 1:, :], axis=1)
    mu = jnp.mean(pooled, axis=-1, keepdims=True)
    var = jnp.mean((pooled - mu) ** 2, axis=-1, keepdims=True)
    x = (pooled - mu) * lax.rsqrt(var + LN_EPS)
    x = x * params["ln_g"] + params["ln_b"]
    x = jnp.maximum(x @ params["w1"] + params["b1"], 0.0)
    x = jnp.maximum(x @ params["w2"] + params["b2"], 0.0)
    return jax.nn.sigmoid(x @ params["w3"] + params["b3"])


if __name__ == "__main__":
    # Small shapes consistent with the forward: batch=2, seq=8 (1 CLS + 7
    # patch tokens), hidden=32 (stand-in for BeiT-base's 768).
    B, S, H = 2, 8, 32
    key = jax.random.PRNGKey(0)
    k_h, k_p = jax.random.split(key)

    hidden_states = jax.random.normal(k_h, (B, S, H), jnp.float32)
    params = init_params(k_p, H)

    out = beit_classifier_head(hidden_states, params)
    out = jax.block_until_ready(out)

    assert out.shape == (B, NUM_CLASSES)
    assert bool(jnp.all((out >= 0.0) & (out <= 1.0)))

    ref = reference_head(hidden_states, params)
    assert bool(jnp.allclose(out, ref, rtol=1e-4, atol=1e-4)), (
        f"mismatch: max abs err {float(jnp.max(jnp.abs(out - ref)))}")

    print("KERNEL_OK")
</pallas_src>

<mosaic_0001>
module attributes {stable_mosaic.version = 11 : i64} {
  func.func @beit_head_kernel(%arg0: i32, %arg1: memref<8x8x32xbf16, #tpu.memory_space<vmem>>, %arg2: memref<1x32xf32, #tpu.memory_space<vmem>>, %arg3: memref<1x32xf32, #tpu.memory_space<vmem>>, %arg4: memref<32x256xf32, #tpu.memory_space<vmem>>, %arg5: memref<1x256xf32, #tpu.memory_space<vmem>>, %arg6: memref<256x128xf32, #tpu.memory_space<vmem>>, %arg7: memref<1x128xf32, #tpu.memory_space<vmem>>, %arg8: memref<128x128xf32, #tpu.memory_space<vmem>>, %arg9: memref<1x128xf32, #tpu.memory_space<vmem>>, %arg10: memref<8x128xf32, #tpu.memory_space<vmem>>) attributes {dimension_semantics = [#tpu.dimension_semantics<parallel>], iteration_bounds = array<i64: 1>, scalar_prefetch = 0 : i64, scratch_operands = 0 : i64, tpu.core_type = #tpu.core_type<tc>, window_params = [{transform_indices = @transform_0, window_bounds = array<i64: 8, 8, 32>}, {pipeline_mode = #tpu.pipeline_mode<synchronous>, transform_indices = @transform_1, window_bounds = array<i64: 1, 32>}, {pipeline_mode = #tpu.pipeline_mode<synchronous>, transform_indices = @transform_2, window_bounds = array<i64: 1, 32>}, {pipeline_mode = #tpu.pipeline_mode<synchronous>, transform_indices = @transform_3, window_bounds = array<i64: 32, 256>}, {pipeline_mode = #tpu.pipeline_mode<synchronous>, transform_indices = @transform_4, window_bounds = array<i64: 1, 256>}, {pipeline_mode = #tpu.pipeline_mode<synchronous>, transform_indices = @transform_5, window_bounds = array<i64: 256, 128>}, {pipeline_mode = #tpu.pipeline_mode<synchronous>, transform_indices = @transform_6, window_bounds = array<i64: 1, 128>}, {pipeline_mode = #tpu.pipeline_mode<synchronous>, transform_indices = @transform_7, window_bounds = array<i64: 128, 128>}, {pipeline_mode = #tpu.pipeline_mode<synchronous>, transform_indices = @transform_8, window_bounds = array<i64: 1, 128>}, {transform_indices = @transform_9, window_bounds = array<i64: 8, 128>}]} {
    %c0 = arith.constant 0 : index
    %c0_0 = arith.constant 0 : index
    %c0_1 = arith.constant 0 : index
    %0 = vector.load %arg1[%c0, %c0_0, %c0_1] : memref<8x8x32xbf16, #tpu.memory_space<vmem>>, vector<8x8x32xbf16>
    %1 = arith.extf %0 : vector<8x8x32xbf16> to vector<8x8x32xf32>
    %cst = arith.constant dense<0.000000e+00> : vector<8x32xf32>
    %2 = vector.multi_reduction <add>, %1, %cst [1] : vector<8x8x32xf32> to vector<8x32xf32>
    %3 = vector.extract_strided_slice %1 {offsets = [0, 0, 0], sizes = [8, 1, 32], strides = [1, 1, 1]} : vector<8x8x32xf32> to vector<8x1x32xf32>
    %4 = vector.shape_cast %3 : vector<8x1x32xf32> to vector<8x32xf32>
    %5 = arith.subf %2, %4 : vector<8x32xf32>
    %cst_2 = arith.constant 0.142857149 : f32
    %6 = vector.broadcast %cst_2 : f32 to vector<8x32xf32>
    %7 = arith.mulf %5, %6 : vector<8x32xf32>
    %cst_3 = arith.constant dense<0.000000e+00> : vector<8xf32>
    %8 = vector.multi_reduction <add>, %7, %cst_3 [1] : vector<8x32xf32> to vector<8xf32>
    %9 = vector.shape_cast %8 : vector<8xf32> to vector<8x1xf32>
    %cst_4 = arith.constant 3.200000e+01 : f32
    %10 = vector.broadcast %cst_4 : f32 to vector<8x1xf32>
    %11 = arith.divf %9, %10 : vector<8x1xf32>
    %12 = vector.broadcast %11 : vector<8x1xf32> to vector<8x32xf32>
    %13 = arith.subf %7, %12 : vector<8x32xf32>
    %14 = arith.mulf %13, %13 : vector<8x32xf32>
    %cst_5 = arith.constant dense<0.000000e+00> : vector<8xf32>
    %15 = vector.multi_reduction <add>, %14, %cst_5 [1] : vector<8x32xf32> to vector<8xf32>
    %16 = vector.shape_cast %15 : vector<8xf32> to vector<8x1xf32>
    %cst_6 = arith.constant 3.200000e+01 : f32
    %17 = vector.broadcast %cst_6 : f32 to vector<8x1xf32>
    %18 = arith.divf %16, %17 : vector<8x1xf32>
    %19 = vector.broadcast %11 : vector<8x1xf32> to vector<8x32xf32>
    %20 = arith.subf %7, %19 : vector<8x32xf32>
    %cst_7 = arith.constant 9.99999996E-13 : f32
    %21 = vector.broadcast %cst_7 : f32 to vector<8x1xf32>
    %22 = arith.addf %18, %21 : vector<8x1xf32>
    %23 = math.rsqrt %22 : vector<8x1xf32>
    %24 = vector.broadcast %23 : vector<8x1xf32> to vector<8x32xf32>
    %25 = arith.mulf %20, %24 : vector<8x32xf32>
    %c0_8 = arith.constant 0 : index
    %c0_9 = arith.constant 0 : index
    %26 = vector.load %arg2[%c0_8, %c0_9] : memref<1x32xf32, #tpu.memory_space<vmem>>, vector<1x32xf32>
    %27 = vector.broadcast %26 : vector<1x32xf32> to vector<8x32xf32>
    %28 = arith.mulf %25, %27 : vector<8x32xf32>
    %c0_10 = arith.constant 0 : index
    %c0_11 = arith.constant 0 : index
    %29 = vector.load %arg3[%c0_10, %c0_11] : memref<1x32xf32, #tpu.memory_space<vmem>>, vector<1x32xf32>
    %30 = vector.broadcast %29 : vector<1x32xf32> to vector<8x32xf32>
    %31 = arith.addf %28, %30 : vector<8x32xf32>
    %c0_12 = arith.constant 0 : index
    %c0_13 = arith.constant 0 : index
    %32 = vector.load %arg4[%c0_12, %c0_13] : memref<32x256xf32, #tpu.memory_space<vmem>>, vector<32x256xf32>
    %cst_14 = arith.constant dense<0.000000e+00> : vector<8x256xf32>
    %33 = tpu.matmul %31, %32, %cst_14 {dimension_numbers = #tpu.dot_dimension_numbers<[1], [0], [0], [1], [0, 0, 1, 1], [], []>} : vector<8x32xf32>, vector<32x256xf32>, vector<8x256xf32> -> vector<8x256xf32>
    %c0_15 = arith.constant 0 : index
    %c0_16 = arith.constant 0 : index
    %34 = vector.load %arg5[%c0_15, %c0_16] : memref<1x256xf32, #tpu.memory_space<vmem>>, vector<1x256xf32>
    %35 = vector.broadcast %34 : vector<1x256xf32> to vector<8x256xf32>
    %36 = arith.addf %33, %35 : vector<8x256xf32>
    %cst_17 = arith.constant 0.000000e+00 : f32
    %37 = vector.broadcast %cst_17 : f32 to vector<8x256xf32>
    %38 = arith.maximumf %36, %37 : vector<8x256xf32>
    %c0_18 = arith.constant 0 : index
    %c0_19 = arith.constant 0 : index
    %39 = vector.load %arg6[%c0_18, %c0_19] : memref<256x128xf32, #tpu.memory_space<vmem>>, vector<256x128xf32>
    %cst_20 = arith.constant dense<0.000000e+00> : vector<8x128xf32>
    %40 = tpu.matmul %38, %39, %cst_20 {dimension_numbers = #tpu.dot_dimension_numbers<[1], [0], [0], [1], [0, 0, 1, 1], [], []>} : vector<8x256xf32>, vector<256x128xf32>, vector<8x128xf32> -> vector<8x128xf32>
    %c0_21 = arith.constant 0 : index
    %c0_22 = arith.constant 0 : index
    %41 = vector.load %arg7[%c0_21, %c0_22] : memref<1x128xf32, #tpu.memory_space<vmem>>, vector<1x128xf32>
    %42 = vector.broadcast %41 : vector<1x128xf32> to vector<8x128xf32>
    %43 = arith.addf %40, %42 : vector<8x128xf32>
    %cst_23 = arith.constant 0.000000e+00 : f32
    %44 = vector.broadcast %cst_23 : f32 to vector<8x128xf32>
    %45 = arith.maximumf %43, %44 : vector<8x128xf32>
    %c0_24 = arith.constant 0 : index
    %c0_25 = arith.constant 0 : index
    %46 = vector.load %arg8[%c0_24, %c0_25] : memref<128x128xf32, #tpu.memory_space<vmem>>, vector<128x128xf32>
    %cst_26 = arith.constant dense<0.000000e+00> : vector<8x128xf32>
    %47 = tpu.matmul %45, %46, %cst_26 {dimension_numbers = #tpu.dot_dimension_numbers<[1], [0], [0], [1], [0, 0, 1, 1], [], []>} : vector<8x128xf32>, vector<128x128xf32>, vector<8x128xf32> -> vector<8x128xf32>
    %c0_27 = arith.constant 0 : index
    %c0_28 = arith.constant 0 : index
    %48 = vector.load %arg9[%c0_27, %c0_28] : memref<1x128xf32, #tpu.memory_space<vmem>>, vector<1x128xf32>
    %49 = vector.broadcast %48 : vector<1x128xf32> to vector<8x128xf32>
    %50 = arith.addf %47, %49 : vector<8x128xf32>
    %51 = arith.negf %50 : vector<8x128xf32>
    %52 = math.exp %51 : vector<8x128xf32>
    %cst_29 = arith.constant 1.000000e+00 : f32
    %53 = vector.broadcast %cst_29 : f32 to vector<8x128xf32>
    %54 = arith.addf %53, %52 : vector<8x128xf32>
    %55 = arith.divf %53, %54 : vector<8x128xf32>
    %c0_30 = arith.constant 0 : index
    %c0_31 = arith.constant 0 : index
    %56 = vector.load %arg10[%c0_30, %c0_31] : memref<8x128xf32, #tpu.memory_space<vmem>>, vector<8x128xf32>
    tpu.vector_store %arg10[%c0_30, %c0_31], %55 {strides = array<i32>} : memref<8x128xf32, #tpu.memory_space<vmem>>, vector<8x128xf32>,
    return
  }
  func.func @transform_0(%arg0: i32) -> (i32, i32, i32) {
    %c0_i32 = arith.constant 0 : i32
    %c0_i32_0 = arith.constant 0 : i32
    %c0_i32_1 = arith.constant 0 : i32
    return %arg0, %c0_i32, %c0_i32_0 : i32, i32, i32
  }
  func.func @transform_1(%arg0: i32) -> (i32, i32) {
    %c0_i32 = arith.constant 0 : i32
    %c0_i32_0 = arith.constant 0 : i32
    %c0_i32_1 = arith.constant 0 : i32
    return %c0_i32, %c0_i32_0 : i32, i32
  }
  func.func @transform_2(%arg0: i32) -> (i32, i32) {
    %c0_i32 = arith.constant 0 : i32
    %c0_i32_0 = arith.constant 0 : i32
    %c0_i32_1 = arith.constant 0 : i32
    return %c0_i32, %c0_i32_0 : i32, i32
  }
  func.func @transform_3(%arg0: i32) -> (i32, i32) {
    %c0_i32 = arith.constant 0 : i32
    %c0_i32_0 = arith.constant 0 : i32
    %c0_i32_1 = arith.constant 0 : i32
    return %c0_i32, %c0_i32_0 : i32, i32
  }
  func.func @transform_4(%arg0: i32) -> (i32, i32) {
    %c0_i32 = arith.constant 0 : i32
    %c0_i32_0 = arith.constant 0 : i32
    %c0_i32_1 = arith.constant 0 : i32
    return %c0_i32, %c0_i32_0 : i32, i32
  }
  func.func @transform_5(%arg0: i32) -> (i32, i32) {
    %c0_i32 = arith.constant 0 : i32
    %c0_i32_0 = arith.constant 0 : i32
    %c0_i32_1 = arith.constant 0 : i32
    return %c0_i32, %c0_i32_0 : i32, i32
  }
  func.func @transform_6(%arg0: i32) -> (i32, i32) {
    %c0_i32 = arith.constant 0 : i32
    %c0_i32_0 = arith.constant 0 : i32
    %c0_i32_1 = arith.constant 0 : i32
    return %c0_i32, %c0_i32_0 : i32, i32
  }
  func.func @transform_7(%arg0: i32) -> (i32, i32) {
    %c0_i32 = arith.constant 0 : i32
    %c0_i32_0 = arith.constant 0 : i32
    %c0_i32_1 = arith.constant 0 : i32
    return %c0_i32, %c0_i32_0 : i32, i32
  }
  func.func @transform_8(%arg0: i32) -> (i32, i32) {
    %c0_i32 = arith.constant 0 : i32
    %c0_i32_0 = arith.constant 0 : i32
    %c0_i32_1 = arith.constant 0 : i32
    return %c0_i32, %c0_i32_0 : i32, i32
  }
  func.func @transform_9(%arg0: i32) -> (i32, i32) {
    %c0_i32 = arith.constant 0 : i32
    %c0_i32_0 = arith.constant 0 : i32
    return %arg0, %c0_i32 : i32, i32
  }
}

</mosaic_0001>

<llo_original>
// kernel: tpu_custom_call.1
$region0: #{tpu_custom_call.1}
  #allocation0 [shape = 'u32[]', space=smem, size = 0x4, offset = 0x4, fixed_abs, tag = 'smem constant byte address 0x4 - core index']
  #allocation1 [shape = 'u32[72,128]{1,0:T(1,128)}', space=vmem, size = 0x9000, scoped, tag = 'internal scratch']
  %s0 = inlined_call_operand.hbm [shape: bf16[8,8,32], index: 0, kind: input, shape index: {}]
  %s1 = inlined_call_operand.hbm [shape: f32[1,32], index: 1, kind: input, shape index: {}]
  %s2 = inlined_call_operand.vmem [shape: f32[1,32], index: 2, kind: input, shape index: {}]
  %s3 = inlined_call_operand.hbm [shape: f32[32,256], index: 3, kind: input, shape index: {}]
  %s4 = inlined_call_operand.vmem [shape: f32[1,256], index: 4, kind: input, shape index: {}]
  %s5 = inlined_call_operand.hbm [shape: f32[256,128], index: 5, kind: input, shape index: {}]
  %s6 = inlined_call_operand.vmem [shape: f32[1,128], index: 6, kind: input, shape index: {}]
  %s7 = inlined_call_operand.hbm [shape: f32[128,128], index: 7, kind: input, shape index: {}]
  %s8 = inlined_call_operand.vmem [shape: f32[1,128], index: 8, kind: input, shape index: {}]
  %s9 = inlined_call_operand.hbm [shape: f32[8,128], index: 9, kind: output, shape index: {}]
  %s10 = sld [smem:[#allocation0]]
  $region66: #{tpu_custom_call.1} parent=0
    _
  %s12 = ssub.s32 1, %s10
  %s13 = scalar_select 0, %s12, %s10
  $region1: #{tpu_custom_call.1} parent=0
    #allocation2 [shape = 'u8[16384]{0}', space=vmem, size = 0x4000, scoped, tag = 'input window, operand 0, single buffered']
    #allocation3 [shape = 's32[1]{0}', space=sflag, size = 0x4, scoped, tag = 'scoped memory for tpu_custom_call.1']
    #allocation4 [shape = 's32[1]{0}', space=sflag, size = 0x4, scoped, tag = 'scoped memory for tpu_custom_call.1']
    #allocation5 [shape = 'u8[512]{0}', space=vmem, size = 0x400, scoped, tag = 'input window, operand 1, single buffered']
    #allocation6 [shape = 's32[1]{0}', space=sflag, size = 0x4, scoped, tag = 'scoped memory for tpu_custom_call.1']
    #allocation7 [shape = 'u8[32768]{0}', space=vmem, size = 0x8000, scoped, tag = 'input window, operand 3, single buffered']
    #allocation8 [shape = 'u8[131072]{0}', space=vmem, size = 0x20000, scoped, tag = 'input window, operand 5, single buffered']
    #allocation9 [shape = 's32[1]{0}', space=sflag, size = 0x4, scoped, tag = 'scoped memory for tpu_custom_call.1']
    #allocation10 [shape = 'u8[65536]{0}', space=vmem, size = 0x10000, scoped, tag = 'input window, operand 7, single buffered']
    #allocation11 [shape = 'u8[4096]{0}', space=vmem, size = 0x1000, scoped, tag = 'output window, operand 0, single buffered']
    %14 = vsyncpa [#allocation3], 0
    %15 = vsyncpa [#allocation6], 0
    %16 = vsyncpa [#allocation9], 0
    %17 = vsyncpa [#allocation4], 0
    // Predicated region
    $region2: #{tpu_custom_call.1} parent=1 // pred_check
      _
    $region3: #{tpu_custom_call.1} parent=1 // pred_check_branch
      %19 = sbr.rel (0) target = $region5
    $region4: #{tpu_custom_call.1} parent=1 // pred_region
      %21 = vsyncadd [#allocation3], 0
      %s22 = sshll.u32 %s0, 4
      %s23 = int_to_ptr.hbm [resolvable:$true] %s22
      %s24 = sshll.u32 [#allocation2], 4
      %s25 = int_to_ptr.vmem [resolvable:$true] %s24
      %30 = dma.hbm_to_vmem [thread:$0]  %s23, 512, %s25, [#allocation3], 64, 64, 4
    $region5: #{tpu_custom_call.1} parent=1 // pred_fallthru
      _
    // Predicated region
    $region6: #{tpu_custom_call.1} parent=1 // pred_check
      _
    $region7: #{tpu_custom_call.1} parent=1 // pred_check_branch
      %32 = sbr.rel (0) target = $region9
    $region8: #{tpu_custom_call.1} parent=1 // pred_region
      %34 = vsyncadd [#allocation6], 0
      %s36 = sshll.u32 %s1, 4
      %s37 = int_to_ptr.hbm [resolvable:$true] %s36
      %s38 = sshll.u32 [#allocation5], 4
      %s39 = int_to_ptr.vmem [resolvable:$true] %s38
      %41 = dma.hbm_to_vmem [thread:$0]  %s37, 16, %s39, [#allocation6]
    $region9: #{tpu_custom_call.1} parent=1 // pred_fallthru
      _
    // Predicated region
    $region10: #{tpu_custom_call.1} parent=1 // pred_check
      _
    $region11: #{tpu_custom_call.1} parent=1 // pred_check_branch
      %43 = sbr.rel (0) target = $region13
    $region12: #{tpu_custom_call.1} parent=1 // pred_region
      _
    $region13: #{tpu_custom_call.1} parent=1 // pred_fallthru
      _
    // Predicated region
    $region14: #{tpu_custom_call.1} parent=1 // pred_check
      _
    $region15: #{tpu_custom_call.1} parent=1 // pred_check_branch
      %45 = sbr.rel (0) target = $region17
    $region16: #{tpu_custom_call.1} parent=1 // pred_region
      %47 = vsyncadd [#allocation6], 0
      %s48 = sshll.u32 %s3, 4
      %s49 = int_to_ptr.hbm [resolvable:$true] %s48
      %s50 = sshll.u32 [#allocation7], 4
      %s51 = int_to_ptr.vmem [resolvable:$true] %s50
      %56 = dma.hbm_to_vmem [thread:$0]  %s49, 1024, %s51, [#allocation6], 256, 256, 16
    $region17: #{tpu_custom_call.1} parent=1 // pred_fallthru
      _
    // Predicated region
    $region18: #{tpu_custom_call.1} parent=1 // pred_check
      _
    $region19: #{tpu_custom_call.1} parent=1 // pred_check_branch
      %58 = sbr.rel (0) target = $region21
    $region20: #{tpu_custom_call.1} parent=1 // pred_region
      _
    $region21: #{tpu_custom_call.1} parent=1 // pred_fallthru
      _
    // Predicated region
    $region22: #{tpu_custom_call.1} parent=1 // pred_check
      _
    $region23: #{tpu_custom_call.1} parent=1 // pred_check_branch
      %60 = sbr.rel (0) target = $region25
    $region24: #{tpu_custom_call.1} parent=1 // pred_region
      %62 = vsyncadd [#allocation9], 0
      %s63 = sshll.u32 %s5, 4
      %s64 = int_to_ptr.hbm [resolvable:$true] %s63
      %s65 = sshll.u32 [#allocation8], 4
      %s66 = int_to_ptr.vmem [resolvable:$true] %s65
      %71 = dma.hbm_to_vmem [thread:$0]  %s64, 4096, %s66, [#allocation9], 128, 128, 8
    $region25: #{tpu_custom_call.1} parent=1 // pred_fallthru
      _
    // Predicated region
    $region26: #{tpu_custom_call.1} parent=1 // pred_check
      _
    $region27: #{tpu_custom_call.1} parent=1 // pred_check_branch
      %73 = sbr.rel (0) target = $region29
    $region28: #{tpu_custom_call.1} parent=1 // pred_region
      _
    $region29: #{tpu_custom_call.1} parent=1 // pred_fallthru
      _
    // Predicated region
    $region30: #{tpu_custom_call.1} parent=1 // pred_check
      _
    $region31: #{tpu_custom_call.1} parent=1 // pred_check_branch
      %75 = sbr.rel (0) target = $region33
    $region32: #{tpu_custom_call.1} parent=1 // pred_region
      %77 = vsyncadd [#allocation9], 0
      %s78 = sshll.u32 %s7, 4
      %s79 = int_to_ptr.hbm [resolvable:$true] %s78
      %s80 = sshll.u32 [#allocation10], 4
      %s81 = int_to_ptr.vmem [resolvable:$true] %s80
      %86 = dma.hbm_to_vmem [thread:$0]  %s79, 2048, %s81, [#allocation9], 128, 128, 8
    $region33: #{tpu_custom_call.1} parent=1 // pred_fallthru
      _
    // Predicated region
    $region34: #{tpu_custom_call.1} parent=1 // pred_check
      _
    $region35: #{tpu_custom_call.1} parent=1 // pred_check_branch
      %88 = sbr.rel (0) target = $region37
    $region36: #{tpu_custom_call.1} parent=1 // pred_region
      _
    $region37: #{tpu_custom_call.1} parent=1 // pred_fallthru
      _
    // Predicated region
    $region38: #{tpu_custom_call.1} parent=1 // pred_check
      _
    $region39: #{tpu_custom_call.1} parent=1 // pred_check_branch
      %90 = sbr.rel (0) target = $region41
    $region40: #{tpu_custom_call.1} parent=1 // pred_region
      %92 = dma.done [#allocation3], 512
    $region41: #{tpu_custom_call.1} parent=1 // pred_fallthru
      _
    // Predicated region
    $region42: #{tpu_custom_call.1} parent=1 // pred_check
      _
    $region43: #{tpu_custom_call.1} parent=1 // pred_check_branch
      %94 = sbr.rel (0) target = $region45
    $region44: #{tpu_custom_call.1} parent=1 // pred_region
      %96 = dma.done [#allocation6], 16
    $region45: #{tpu_custom_call.1} parent=1 // pred_fallthru
      _
    // Predicated region
    $region46: #{tpu_custom_call.1} parent=1 // pred_check
      _
    $region47: #{tpu_custom_call.1} parent=1 // pred_check_branch
      %98 = sbr.rel (0) target = $region49
    $region48: #{tpu_custom_call.1} parent=1 // pred_region
      %100 = dma.done [#allocation6], 1024
    $region49: #{tpu_custom_call.1} parent=1 // pred_fallthru
      _
    // Predicated region
    $region50: #{tpu_custom_call.1} parent=1 // pred_check
      _
    $region51: #{tpu_custom_call.1} parent=1 // pred_check_branch
      %102 = sbr.rel (0) target = $region53
    $region52: #{tpu_custom_call.1} parent=1 // pred_region
      %104 = dma.done [#allocation9], 4096
    $region53: #{tpu_custom_call.1} parent=1 // pred_fallthru
      _
    // Predicated region
    $region54: #{tpu_custom_call.1} parent=1 // pred_check
      _
    $region55: #{tpu_custom_call.1} parent=1 // pred_check_branch
      %106 = sbr.rel (0) target = $region57
    $region56: #{tpu_custom_call.1} parent=1 // pred_region
      %108 = dma.done [#allocation9], 2048
    $region57: #{tpu_custom_call.1} parent=1 // pred_fallthru
      _
    %v109 = vld [vmem:[#allocation2] sm:$0xf]
    %v110 = vld [vmem:[#allocation2 + $0x4] sm:$0xf]
    %v111 = vld [vmem:[#allocation2 + $0x8] sm:$0xf]
    %v112 = vld [vmem:[#allocation2 + $0xc] sm:$0xf]
    %v113 = vld [vmem:[#allocation2 + $0x10] sm:$0xf]
    %v114 = vld [vmem:[#allocation2 + $0x14] sm:$0xf]
    %v115 = vld [vmem:[#allocation2 + $0x18] sm:$0xf]
    %v116 = vld [vmem:[#allocation2 + $0x1c] sm:$0xf]
    %v117 = vunpack.c.l.bf16 %v109
    %v118 = vunpack.c.l.bf16 %v110
    %v119 = vunpack.c.l.bf16 %v111
    %v120 = vunpack.c.l.bf16 %v112
    %v121 = vunpack.c.l.bf16 %v113
    %v122 = vunpack.c.l.bf16 %v114
    %v123 = vunpack.c.l.bf16 %v115
    %v124 = vunpack.c.l.bf16 %v116
    %vm125 = vcmask 261120
    %v126 = vsel %vm125, %v117, 0.0
    %v127 = vrot.slane %v126, 4
    %v128 = vadd.f32 %v126, %v127
    %v129 = vrot.slane %v128, 2
    %v130 = vadd.f32 %v128, %v129
    %v131 = vrot.slane %v130, 1
    %v132 = vadd.f32 %v130, %v131
    %v133 = vsel %vm125, %v118, 0.0
    %v134 = vrot.slane %v133, 4
    %v135 = vadd.f32 %v133, %v134
    %v136 = vrot.slane %v135, 2
    %v137 = vadd.f32 %v135, %v136
    %v138 = vrot.slane %v137, 1
    %v139 = vadd.f32 %v137, %v138
    %v140 = vsel %vm125, %v119, 0.0
    %v141 = vrot.slane %v140, 4
    %v142 = vadd.f32 %v140, %v141
    %v143 = vrot.slane %v142, 2
    %v144 = vadd.f32 %v142, %v143
    %v145 = vrot.slane %v144, 1
    %v146 = vadd.f32 %v144, %v145
    %v147 = vsel %vm125, %v120, 0.0
    %v148 = vrot.slane %v147, 4
    %v149 = vadd.f32 %v147, %v148
    %v150 = vrot.slane %v149, 2
    %v151 = vadd.f32 %v149, %v150
    %v152 = vrot.slane %v151, 1
    %v153 = vadd.f32 %v151, %v152
    %v154 = vsel %vm125, %v121, 0.0
    %v155 = vrot.slane %v154, 4
    %v156 = vadd.f32 %v154, %v155
    %v157 = vrot.slane %v156, 2
    %v158 = vadd.f32 %v156, %v157
    %v159 = vrot.slane %v158, 1
    %v160 = vadd.f32 %v158, %v159
    %v161 = vsel %vm125, %v122, 0.0
    %v162 = vrot.slane %v161, 4
    %v163 = vadd.f32 %v161, %v162
    %v164 = vrot.slane %v163, 2
    %v165 = vadd.f32 %v163, %v164
    %v166 = vrot.slane %v165, 1
    %v167 = vadd.f32 %v165, %v166
    %v168 = vsel %vm125, %v123, 0.0
    %v169 = vrot.slane %v168, 4
    %v170 = vadd.f32 %v168, %v169
    %v171 = vrot.slane %v170, 2
    %v172 = vadd.f32 %v170, %v171
    %v173 = vrot.slane %v172, 1
    %v174 = vadd.f32 %v172, %v173
    %v175 = vsel %vm125, %v124, 0.0
    %v176 = vrot.slane %v175, 4
    %v177 = vadd.f32 %v175, %v176
    %v178 = vrot.slane %v177, 2
    %v179 = vadd.f32 %v177, %v178
    %v180 = vrot.slane %v179, 1
    %v181 = vadd.f32 %v179, %v180
    %v182 = vsub.f32 %v132, %v117
    %v183 = vsub.f32 %v139, %v118
    %v184 = vsub.f32 %v146, %v119
    %v185 = vsub.f32 %v153, %v120
    %v186 = vsub.f32 %v160, %v121
    %v187 = vsub.f32 %v167, %v122
    %v188 = vsub.f32 %v174, %v123
    %v189 = vsub.f32 %v181, %v124
    %v190 = vmul.f32 %v182, 0.14285715
    %v191 = vmul.f32 %v183, 0.14285715
    %v192 = vmul.f32 %v184, 0.14285715
    %v193 = vmul.f32 %v185, 0.14285715
    %v194 = vmul.f32 %v186, 0.14285715
    %v195 = vmul.f32 %v187, 0.14285715
    %v196 = vmul.f32 %v188, 0.14285715
    %v197 = vmul.f32 %v189, 0.14285715
    %v206 = vrot.slane %v191, 7
    %vm207 = vcmask 1041409
    %v208 = vsel %vm207, %v206, %v190
    %v209 = vrot.slane %v192, 6
    %vm210 = vcmask 1042434
    %v211 = vsel %vm210, %v209, %v208
    %v212 = vrot.slane %v193, 5
    %vm213 = vcmask 1043459
    %v214 = vsel %vm213, %v212, %v211
    %v215 = vrot.slane %v194, 4
    %vm216 = vcmask 1044484
    %v217 = vsel %vm216, %v215, %v214
    %v218 = vrot.slane %v195, 3
    %vm219 = vcmask 1045509
    %v220 = vsel %vm219, %v218, %v217
    %v221 = vrot.slane %v196, 2
    %vm222 = vcmask 1046534
    %v223 = vsel %vm222, %v221, %v220
    %v224 = vrot.slane %v197, 1
    %vm225 = vcmask 1047559
    %v226 = vsel %vm225, %v224, %v223
    %v228 = vsel %vm125, %v226, 0.0
    %229 = vadd.xlane.f32.xlu0 %v228
    %v230 = vpop.xlane.xlu0 %229
    %v231 = vrcp.pop 32.0
    %v232 = vmul.f32 32.0, %v231
    %v233 = vsub.f32 1.0, %v232
    %v234 = vmul.f32 %v231, %v233
    %v235 = vadd.f32 %v231, %v234
    %vm236 = vweird.f32 %v231
    %v237 = vsel %vm236, %v231, %v235
    %v238 = vmul.f32 %v230, %v237
    %v240 = vrot.slane %v238, 1
    %v241 = vrot.slane %v238, 2
    %v242 = vrot.slane %v238, 3
    %v243 = vrot.slane %v238, 4
    %v244 = vrot.slane %v238, 5
    %v245 = vrot.slane %v238, 6
    %v246 = vrot.slane %v238, 7
    %v255 = vsub.f32 %v190, %v238
    %v256 = vsub.f32 %v191, %v240
    %v257 = vsub.f32 %v192, %v241
    %v258 = vsub.f32 %v193, %v242
    %v259 = vsub.f32 %v194, %v243
    %v260 = vsub.f32 %v195, %v244
    %v261 = vsub.f32 %v196, %v245
    %v262 = vsub.f32 %v197, %v246
    %v263 = vmul.f32 %v255, %v255
    %v264 = vmul.f32 %v256, %v256
    %v265 = vmul.f32 %v257, %v257
    %v266 = vmul.f32 %v258, %v258
    %v267 = vmul.f32 %v259, %v259
    %v268 = vmul.f32 %v260, %v260
    %v269 = vmul.f32 %v261, %v261
    %v270 = vmul.f32 %v262, %v262
    %v279 = vrot.slane %v264, 7
    %v280 = vsel %vm207, %v279, %v263
    %v281 = vrot.slane %v265, 6
    %v282 = vsel %vm210, %v281, %v280
    %v283 = vrot.slane %v266, 5
    %v284 = vsel %vm213, %v283, %v282
    %v285 = vrot.slane %v267, 4
    %v286 = vsel %vm216, %v285, %v284
    %v287 = vrot.slane %v268, 3
    %v288 = vsel %vm219, %v287, %v286
    %v289 = vrot.slane %v269, 2
    %v290 = vsel %vm222, %v289, %v288
    %v291 = vrot.slane %v270, 1
    %v292 = vsel %vm225, %v291, %v290
    %v294 = vsel %vm125, %v292, 0.0
    %295 = vadd.xlane.f32.xlu0 %v294
    %v296 = vpop.xlane.xlu0 %295
    %v297 = vmul.f32 %v296, %v237
    %v298 = vadd.f32 %v297, 1e-12
    %v299 = vrsqrt.pop %v298
    %v300 = vmul.f32 %v299, %v298
    %v301 = vmul.f32 %v300, %v299
    %v302 = vmul.f32 0.5, %v301
    %v303 = vsub.f32 1.5, %v302
    %v304 = vmul.f32 %v299, %v303
    %vm305 = vweird.f32 %v298
    %vm306 = vweird.f32 %v299
    %vm307 = vmor %vm305, %vm306
    %v308 = vsel %vm307, %v299, %v304
    %v310 = vrot.slane %v308, 1
    %v311 = vrot.slane %v308, 2
    %v312 = vrot.slane %v308, 3
    %v313 = vrot.slane %v308, 4
    %v314 = vrot.slane %v308, 5
    %v315 = vrot.slane %v308, 6
    %v316 = vrot.slane %v308, 7
    %v325 = vmul.f32 %v255, %v308
    %v326 = vmul.f32 %v256, %v310
    %v327 = vmul.f32 %v257, %v311
    %v328 = vmul.f32 %v258, %v312
    %v329 = vmul.f32 %v259, %v313
    %v330 = vmul.f32 %v260, %v314
    %v331 = vmul.f32 %v261, %v315
    %v332 = vmul.f32 %v262, %v316
    %v333 = vld [vmem:[#allocation5] sm:$0x1]
    %v335 = vperm.slane %v333, 0
    %v337 = vmul.f32 %v325, %v335
    %v338 = vmul.f32 %v326, %v335
    %v339 = vmul.f32 %v327, %v335
    %v340 = vmul.f32 %v328, %v335
    %v341 = vmul.f32 %v329, %v335
    %v342 = vmul.f32 %v330, %v335
    %v343 = vmul.f32 %v331, %v335
    %v344 = vmul.f32 %v332, %v335
    %v345 = vld [vmem:[%s2] sm:$0x1]
    %v347 = vperm.slane %v345, 0
    %v349 = vadd.f32 %v337, %v347
    %v350 = vadd.f32 %v338, %v347
    %v351 = vadd.f32 %v339, %v347
    %v352 = vadd.f32 %v340, %v347
    %v353 = vadd.f32 %v341, %v347
    %v354 = vadd.f32 %v342, %v347
    %v355 = vadd.f32 %v343, %v347
    %v356 = vadd.f32 %v344, %v347
    %v357 = vld [vmem:[#allocation7] sm:$0xff]
    %v358 = vld [vmem:[#allocation7 + $0x8] sm:$0xff]
    %v359 = vld [vmem:[#allocation7 + $0x10] sm:$0xff]
    %v360 = vld [vmem:[#allocation7 + $0x18] sm:$0xff]
    %v361 = vld [vmem:[#allocation7 + $0x20] sm:$0xff]
    %v362 = vld [vmem:[#allocation7 + $0x28] sm:$0xff]
    %v363 = vld [vmem:[#allocation7 + $0x30] sm:$0xff]
    %v364 = vld [vmem:[#allocation7 + $0x38] sm:$0xff]
    %v365 = vld [vmem:[%s4] sm:$0x3]
    %v367 = vperm.slane %v365, 0
    %v368 = vperm.slane %v365, 1
    %v379 = vrot.slane %v350, 7
    %v380 = vsel %vm207, %v379, %v349
    %v381 = vrot.slane %v351, 6
    %v382 = vsel %vm210, %v381, %v380
    %v383 = vrot.slane %v352, 5
    %v384 = vsel %vm213, %v383, %v382
    %v385 = vrot.slane %v353, 4
    %v386 = vsel %vm216, %v385, %v384
    %v387 = vrot.slane %v354, 3
    %v388 = vsel %vm219, %v387, %v386
    %v389 = vrot.slane %v355, 2
    %v390 = vsel %vm222, %v389, %v388
    %v391 = vrot.slane %v356, 1
    %v392 = vsel %vm225, %v391, %v390
    %v393 = vsel %vm125, %v392, 0
    %395 = vmatpush.msra.mxu0 0.0
    %396 = vmatpush.msra.mxu0 0.0
    %397 = vmatpush.msra.mxu0 0.0
    %398 = vmatpush.msra.mxu0 0.0
    %399 = vmatpush.msra.mxu0 0.0
    %400 = vmatpush.msra.mxu0 0.0
    %401 = vmatpush.msra.mxu0 0.0
    %402 = vmatpush.msra.mxu0 0.0
    %403 = vmatpush.msra.mxu0 0.0
    %404 = vmatpush.msra.mxu0 0.0
    %405 = vmatpush.msra.mxu0 0.0
    %406 = vmatpush.msra.mxu0 0.0
    %407 = vmatpush.msra.mxu0 %v363
    %408 = vmatpush.msra.mxu0 %v361
    %409 = vmatpush.msra.mxu0 %v359
    %410 = vmatpush.msra.mxu0 %v357
    %411 = vmatmul.f32.gmra.mxu0 %v393
    %v412 = vpop.f32.mrf.mxu0
    %v413 = vadd.f32 %v367, %v412
    %414 = vdwg.mxu0
    %415 = vmatpush.msra.mxu0 0.0
    %416 = vmatpush.msra.mxu0 0.0
    %417 = vmatpush.msra.mxu0 0.0
    %418 = vmatpush.msra.mxu0 0.0
    %419 = vmatpush.msra.mxu0 0.0
    %420 = vmatpush.msra.mxu0 0.0
    %421 = vmatpush.msra.mxu0 0.0
    %422 = vmatpush.msra.mxu0 0.0
    %423 = vmatpush.msra.mxu0 0.0
    %424 = vmatpush.msra.mxu0 0.0
    %425 = vmatpush.msra.mxu0 0.0
    %426 = vmatpush.msra.mxu0 0.0
    %427 = vmatpush.msra.mxu0 %v364
    %428 = vmatpush.msra.mxu0 %v362
    %429 = vmatpush.msra.mxu0 %v360
    %430 = vmatpush.msra.mxu0 %v358
    %431 = vmatmul.f32.gmra.mxu0 %v393
    %v432 = vpop.f32.mrf.mxu0
    %v433 = vadd.f32 %v368, %v432
    %434 = vdwg.mxu0
    %v435 = vmax.f32 %v413, 0.0
    %v436 = vmax.f32 %v433, 0.0
    %v437 = vld [vmem:[#allocation8] sm:$0xff]
    %v438 = vld [vmem:[#allocation8 + $0x8] sm:$0xff]
    %v439 = vld [vmem:[#allocation8 + $0x10] sm:$0xff]
    %v440 = vld [vmem:[#allocation8 + $0x18] sm:$0xff]
    %v441 = vld [vmem:[#allocation8 + $0x20] sm:$0xff]
    %v442 = vld [vmem:[#allocation8 + $0x28] sm:$0xff]
    %v443 = vld [vmem:[#allocation8 + $0x30] sm:$0xff]
    %v444 = vld [vmem:[#allocation8 + $0x38] sm:$0xff]
    %v445 = vld [vmem:[#allocation8 + $0x40] sm:$0xff]
    %v446 = vld [vmem:[#allocation8 + $0x48] sm:$0xff]
    %v447 = vld [vmem:[#allocation8 + $0x50] sm:$0xff]
    %v448 = vld [vmem:[#allocation8 + $0x58] sm:$0xff]
    %v449 = vld [vmem:[#allocation8 + $0x60] sm:$0xff]
    %v450 = vld [vmem:[#allocation8 + $0x68] sm:$0xff]
    %v451 = vld [vmem:[#allocation8 + $0x70] sm:$0xff]
    %v452 = vld [vmem:[#allocation8 + $0x78] sm:$0xff]
    %v453 = vld [vmem:[#allocation8 + $0x80] sm:$0xff]
    %v454 = vld [vmem:[#allocation8 + $0x88] sm:$0xff]
    %v455 = vld [vmem:[#allocation8 + $0x90] sm:$0xff]
    %v456 = vld [vmem:[#allocation8 + $0x98] sm:$0xff]
    %v457 = vld [vmem:[#allocation8 + $0xa0] sm:$0xff]
    %v458 = vld [vmem:[#allocation8 + $0xa8] sm:$0xff]
    %v459 = vld [vmem:[#allocation8 + $0xb0] sm:$0xff]
    %v460 = vld [vmem:[#allocation8 + $0xb8] sm:$0xff]
    %v461 = vld [vmem:[#allocation8 + $0xc0] sm:$0xff]
    %v462 = vld [vmem:[#allocation8 + $0xc8] sm:$0xff]
    %v463 = vld [vmem:[#allocation8 + $0xd0] sm:$0xff]
    %v464 = vld [vmem:[#allocation8 + $0xd8] sm:$0xff]
    %v465 = vld [vmem:[#allocation8 + $0xe0] sm:$0xff]
    %v466 = vld [vmem:[#allocation8 + $0xe8] sm:$0xff]
    %v467 = vld [vmem:[#allocation8 + $0xf0] sm:$0xff]
    %v468 = vld [vmem:[#allocation8 + $0xf8] sm:$0xff]
    %v469 = vld [vmem:[%s6] sm:$0x1]
    %v471 = vperm.slane %v469, 0
    %473 = vmatpush.msra.mxu0 %v452
    %474 = vmatpush.msra.mxu0 %v451
    %475 = vmatpush.msra.mxu0 %v450
    %476 = vmatpush.msra.mxu0 %v449
    %477 = vmatpush.msra.mxu0 %v448
    %478 = vmatpush.msra.mxu0 %v447
    %479 = vmatpush.msra.mxu0 %v446
    %480 = vmatpush.msra.mxu0 %v445
    %481 = vmatpush.msra.mxu0 %v444
    %482 = vmatpush.msra.mxu0 %v443
    %483 = vmatpush.msra.mxu0 %v442
    %484 = vmatpush.msra.mxu0 %v441
    %485 = vmatpush.msra.mxu0 %v440
    %486 = vmatpush.msra.mxu0 %v439
    %487 = vmatpush.msra.mxu0 %v438
    %488 = vmatpush.msra.mxu0 %v437
    %489 = vmatmul.f32.gmra.mxu0 %v435
    %v490 = vpop.f32.mrf.mxu0
    %v491 = vadd.f32 %v471, %v490
    %492 = vdwg.mxu0
    %493 = vmatpush.msra.mxu0 %v468
    %494 = vmatpush.msra.mxu0 %v467
    %495 = vmatpush.msra.mxu0 %v466
    %496 = vmatpush.msra.mxu0 %v465
    %497 = vmatpush.msra.mxu0 %v464
    %498 = vmatpush.msra.mxu0 %v463
    %499 = vmatpush.msra.mxu0 %v462
    %500 = vmatpush.msra.mxu0 %v461
    %501 = vmatpush.msra.mxu0 %v460
    %502 = vmatpush.msra.mxu0 %v459
    %503 = vmatpush.msra.mxu0 %v458
    %504 = vmatpush.msra.mxu0 %v457
    %505 = vmatpush.msra.mxu0 %v456
    %506 = vmatpush.msra.mxu0 %v455
    %507 = vmatpush.msra.mxu0 %v454
    %508 = vmatpush.msra.mxu0 %v453
    %509 = vmatmul.f32.gmra.mxu0 %v436
    %v510 = vpop.f32.mrf.mxu0
    %v511 = vadd.f32 %v491, %v510
    %512 = vdwg.mxu0
    %v513 = vmax.f32 %v511, 0.0
    %v514 = vld [vmem:[#allocation10] sm:$0xff]
    %v515 = vld [vmem:[#allocation10 + $0x8] sm:$0xff]
    %v516 = vld [vmem:[#allocation10 + $0x10] sm:$0xff]
    %v517 = vld [vmem:[#allocation10 + $0x18] sm:$0xff]
    %v518 = vld [vmem:[#allocation10 + $0x20] sm:$0xff]
    %v519 = vld [vmem:[#allocation10 + $0x28] sm:$0xff]
    %v520 = vld [vmem:[#allocation10 + $0x30] sm:$0xff]
    %v521 = vld [vmem:[#allocation10 + $0x38] sm:$0xff]
    %v522 = vld [vmem:[#allocation10 + $0x40] sm:$0xff]
    %v523 = vld [vmem:[#allocation10 + $0x48] sm:$0xff]
    %v524 = vld [vmem:[#allocation10 + $0x50] sm:$0xff]
    %v525 = vld [vmem:[#allocation10 + $0x58] sm:$0xff]
    %v526 = vld [vmem:[#allocation10 + $0x60] sm:$0xff]
    %v527 = vld [vmem:[#allocation10 + $0x68] sm:$0xff]
    %v528 = vld [vmem:[#allocation10 + $0x70] sm:$0xff]
    %v529 = vld [vmem:[#allocation10 + $0x78] sm:$0xff]
    %v530 = vld [vmem:[%s8] sm:$0x1]
    %v532 = vperm.slane %v530, 0
    %534 = vmatpush.msra.mxu0 %v529
    %535 = vmatpush.msra.mxu0 %v528
    %536 = vmatpush.msra.mxu0 %v527
    %537 = vmatpush.msra.mxu0 %v526
    %538 = vmatpush.msra.mxu0 %v525
    %539 = vmatpush.msra.mxu0 %v524
    %540 = vmatpush.msra.mxu0 %v523
    %541 = vmatpush.msra.mxu0 %v522
    %542 = vmatpush.msra.mxu0 %v521
    %543 = vmatpush.msra.mxu0 %v520
    %544 = vmatpush.msra.mxu0 %v519
    %545 = vmatpush.msra.mxu0 %v518
    %546 = vmatpush.msra.mxu0 %v517
    %547 = vmatpush.msra.mxu0 %v516
    %548 = vmatpush.msra.mxu0 %v515
    %549 = vmatpush.msra.mxu0 %v514
    %550 = vmatmul.f32.gmra.mxu0 %v513
    %v551 = vpop.f32.mrf.mxu0
    %v552 = vadd.f32 %v532, %v551
    %553 = vdwg.mxu0
    %v554 = vxor.u32 %v552, 2147483648
    %v555 = vmul.f32 %v554, 1.442695
    %v556 = vpow.pop %v555
    %v557 = vadd.f32 %v556, 1.0
    %v558 = vrcp.pop %v557
    %v559 = vmul.f32 %v557, %v558
    %v560 = vsub.f32 1.0, %v559
    %v561 = vmul.f32 %v558, %v560
    %v562 = vadd.f32 %v558, %v561
    %vm563 = vweird.f32 %v557
    %vm564 = vweird.f32 %v558
    %vm565 = vmor %vm563, %vm564
    %v566 = vsel %vm565, %v558, %v562
    %v567 = vand.u32 2147483647, %v557
    %vm568 = vcmp.eq.f32.partialorder %v567, 8.507059e+37
    %v569 = vand.u32 %v557, 2147483648
    %v570 = vor.u32 1.1754944e-38, %v569
    %v571 = vsel %vm568, %v570, %v566
    %v572 = vmul.f32 1.0, %v571
    %573 = vst [vmem:[#allocation11] sm:$0xff] %v572
    // Predicated region
    $region58: #{tpu_custom_call.1} parent=1 // pred_check
      _
    $region59: #{tpu_custom_call.1} parent=1 // pred_check_branch
      %575 = sbr.rel (0) target = $region61
    $region60: #{tpu_custom_call.1} parent=1 // pred_region
      %577 = vsyncadd [#allocation4], 0
      %s579 = sshll.u32 [#allocation11], 4
      %s580 = int_to_ptr.vmem [resolvable:$true] %s579
      %s581 = sshll.u32 %s9, 4
      %s582 = int_to_ptr.hbm [resolvable:$true] %s581
      %584 = dma.vmem_to_hbm [thread:$0]  %s580, 128, %s582, [#allocation4]
    $region61: #{tpu_custom_call.1} parent=1 // pred_fallthru
      _
    // Predicated region
    $region62: #{tpu_custom_call.1} parent=1 // pred_check
      _
    $region63: #{tpu_custom_call.1} parent=1 // pred_check_branch
      %586 = sbr.rel (0) target = $region65
    $region64: #{tpu_custom_call.1} parent=1 // pred_region
      %588 = dma.done [#allocation4], 128
    $region65: #{tpu_custom_call.1} parent=1 // pred_fallthru
      _
    %589 = vsyncpa [#allocation3], 1
    %590 = vsyncpa [#allocation6], 1
    %591 = vsyncpa [#allocation9], 1
    %592 = vsyncpa [#allocation4], 1

</llo_original>
